<compile_context>
chip_gen: v5e
topology: v5e:2x2
jax: 0.10.0
libtpu: 0.0.40
codegen_flags: <defaults>
</compile_context>

<pallas_src>
import jax
import jax.numpy as jnp
from jax.experimental import pallas as pl
from jax.experimental.pallas import tpu as pltpu


def _round_up(x, m):
    return (x + m - 1) // m * m


def _patch_embed_kernel(p_ref, w_ref, b_ref, o_ref):
    # p_ref: (tm, K) patches, w_ref: (K, tn), b_ref: (1, tn) f32, o_ref: (tm, tn)
    acc = jnp.dot(p_ref[...], w_ref[...], preferred_element_type=jnp.float32)
    o_ref[...] = (acc + b_ref[...]).astype(o_ref.dtype)


def patch_embed(x, weight, bias, patch_size, *, compute_dtype=jnp.bfloat16):
    """Equivalent of PatchEmbed.forward.

    x:      (B, C, H, W)            -- NCHW, like PyTorch
    weight: (embed_dim, C, ph, pw)  -- PyTorch Conv2d weight layout
    bias:   (embed_dim,)
    returns (B, num_patches, embed_dim), dtype of x
    """
    B, C, H, W = x.shape
    ph, pw = patch_size
    E = weight.shape[0]
    gh, gw = H // ph, W // pw
    num_patches = gh * gw
    out_dtype = x.dtype

    # --- layout glue (plain JAX): NCHW -> (B*num_patches, C*ph*pw) ---
    # Cast first so the rearrangement moves half the bytes when compute_dtype
    # is bf16.  Flattening order (c, ph, pw) matches Conv2d's contraction.
    xc = x.astype(compute_dtype)
    patches = xc.reshape(B, C, gh, ph, gw, pw)
    patches = patches.transpose(0, 2, 4, 1, 3, 5)            # (B, gh, gw, C, ph, pw)
    patches = patches.reshape(B * num_patches, C * ph * pw)  # (M, K)

    w_mat = weight.reshape(E, C * ph * pw).T.astype(compute_dtype)  # (K, E)
    b_mat = bias.reshape(1, E).astype(jnp.float32)                   # (1, E)

    M, K = patches.shape
    N = E

    # --- padding for alignment: K, N -> multiples of 128 (MXU depth, lane-
    # dense output); M -> multiple of the M tile (multiple of 8).
    K_pad = _round_up(K, 128)
    N_pad = _round_up(N, 128)
    tm = 512 if M >= 512 else _round_up(M, 8)
    M_pad = _round_up(M, tm)

    # --- N tile: prefer full-N (weight/bias fully VMEM-resident across the M
    # axis, DMA'd once); fall back to 512/256/128 if the double-buffered tile
    # set would exceed a conservative 24 MiB budget (v7x-safe).
    cb = jnp.dtype(compute_dtype).itemsize
    ob = jnp.dtype(out_dtype).itemsize
    vmem_budget = 24 * 1024 * 1024
    tn = 128
    for cand in (N_pad, 512, 256, 128):
        if cand > N_pad or N_pad % cand:
            continue
        need = 2 * ((tm * K_pad + K_pad * cand) * cb + tm * cand * ob + cand * 4)
        if need <= vmem_budget:
            tn = cand
            break

    if (M_pad, K_pad) != (M, K):
        patches = jnp.pad(patches, ((0, M_pad - M), (0, K_pad - K)))
    if (K_pad, N_pad) != (K, N):
        w_mat = jnp.pad(w_mat, ((0, K_pad - K), (0, N_pad - N)))
    if N_pad != N:
        b_mat = jnp.pad(b_mat, ((0, 0), (0, N_pad - N)))

    grid = (M_pad // tm, N_pad // tn)

    out = pl.pallas_call(
        _patch_embed_kernel,
        out_shape=jax.ShapeDtypeStruct((M_pad, N_pad), out_dtype),
        grid=grid,
        in_specs=[
            pl.BlockSpec((tm, K_pad), lambda i, j: (i, 0)),   # patches: stream over M
            pl.BlockSpec((K_pad, tn), lambda i, j: (0, j)),   # weight: resident across M
            pl.BlockSpec((1, tn),     lambda i, j: (0, j)),   # bias:   resident across M
        ],
        out_specs=pl.BlockSpec((tm, tn), lambda i, j: (i, j)),
        compiler_params=pltpu.CompilerParams(
            dimension_semantics=("parallel", "parallel"),
            vmem_limit_bytes=32 * 1024 * 1024,
        ),
    )(patches, w_mat, b_mat)

    out = out[:M, :N]
    return out.reshape(B, num_patches, E)


if __name__ == "__main__":
    # Small shapes consistent with the module: img_size=16, patch_size=4,
    # in_chans=4, embed_dim=32, batch=2  -> num_patches = (16/4)*(16/4) = 16
    B, C, H, W = 2, 4, 16, 16
    ph, pw = 4, 4
    E = 32

    key = jax.random.PRNGKey(0)
    kx, kw, kb = jax.random.split(key, 3)
    x = jax.random.normal(kx, (B, C, H, W), dtype=jnp.float32)
    # Deterministic synthetic parameters (Conv2d shapes: (E, C, ph, pw), (E,))
    weight = jax.random.normal(kw, (E, C, ph, pw), dtype=jnp.float32) * 0.02
    bias = jax.random.normal(kb, (E,), dtype=jnp.float32) * 0.02

    # Reference: plain-JAX strided conv (same semantics as
    # nn.Conv2d(kernel=stride=patch) + flatten(2).transpose(1,2)).
    ref = jax.lax.conv_general_dilated(
        x, weight, window_strides=(ph, pw), padding="VALID",
        dimension_numbers=("NCHW", "OIHW", "NCHW"))
    ref = ref + bias.reshape(1, E, 1, 1)
    ref = ref.reshape(B, E, -1).transpose(0, 2, 1)

    expected_shape = (B, (H // ph) * (W // pw), E)

    # f32 compute path: tight numerical check.
    out_f32 = jax.block_until_ready(
        patch_embed(x, weight, bias, (ph, pw), compute_dtype=jnp.float32))
    assert out_f32.shape == expected_shape, out_f32.shape
    assert jnp.allclose(out_f32, ref, atol=1e-4, rtol=1e-4)

    # bf16 MXU path (default): relaxed check (bf16 inputs, f32 accumulation).
    out_bf16 = jax.block_until_ready(patch_embed(x, weight, bias, (ph, pw)))
    assert out_bf16.shape == expected_shape, out_bf16.shape
    assert jnp.allclose(out_bf16, ref, atol=2e-2, rtol=2e-2)

    print("KERNEL_OK")
</pallas_src>

<mosaic_0001>
module attributes {stable_mosaic.version = 11 : i64} {
  func.func @_patch_embed_kernel(%arg0: i32, %arg1: i32, %arg2: memref<32x128xf32, #tpu.memory_space<vmem>>, %arg3: memref<128x128xf32, #tpu.memory_space<vmem>>, %arg4: memref<1x128xf32, #tpu.memory_space<vmem>>, %arg5: memref<32x128xf32, #tpu.memory_space<vmem>>) attributes {dimension_semantics = [#tpu.dimension_semantics<parallel>, #tpu.dimension_semantics<parallel>], iteration_bounds = array<i64: 1, 1>, scalar_prefetch = 0 : i64, scratch_operands = 0 : i64, tpu.core_type = #tpu.core_type<tc>, window_params = [{transform_indices = @transform_0, window_bounds = array<i64: 32, 128>}, {transform_indices = @transform_1, window_bounds = array<i64: 128, 128>}, {transform_indices = @transform_2, window_bounds = array<i64: 1, 128>}, {transform_indices = @transform_3, window_bounds = array<i64: 32, 128>}]} {
    %c0 = arith.constant 0 : index
    %c0_0 = arith.constant 0 : index
    %0 = vector.load %arg2[%c0, %c0_0] : memref<32x128xf32, #tpu.memory_space<vmem>>, vector<32x128xf32>
    %c0_1 = arith.constant 0 : index
    %c0_2 = arith.constant 0 : index
    %1 = vector.load %arg3[%c0_1, %c0_2] : memref<128x128xf32, #tpu.memory_space<vmem>>, vector<128x128xf32>
    %cst = arith.constant dense<0.000000e+00> : vector<32x128xf32>
    %2 = tpu.matmul %0, %1, %cst {dimension_numbers = #tpu.dot_dimension_numbers<[1], [0], [0], [1], [0, 0, 1, 1], [], []>} : vector<32x128xf32>, vector<128x128xf32>, vector<32x128xf32> -> vector<32x128xf32>
    %c0_3 = arith.constant 0 : index
    %c0_4 = arith.constant 0 : index
    %3 = vector.load %arg4[%c0_3, %c0_4] : memref<1x128xf32, #tpu.memory_space<vmem>>, vector<1x128xf32>
    %4 = vector.broadcast %3 : vector<1x128xf32> to vector<32x128xf32>
    %5 = arith.addf %2, %4 : vector<32x128xf32>
    %c0_5 = arith.constant 0 : index
    %c0_6 = arith.constant 0 : index
    %6 = vector.load %arg5[%c0_5, %c0_6] : memref<32x128xf32, #tpu.memory_space<vmem>>, vector<32x128xf32>
    tpu.vector_store %arg5[%c0_5, %c0_6], %5 {strides = array<i32>} : memref<32x128xf32, #tpu.memory_space<vmem>>, vector<32x128xf32>,
    return
  }
  func.func @transform_0(%arg0: i32, %arg1: i32) -> (i32, i32) {
    %c0_i32 = arith.constant 0 : i32
    %c0_i32_0 = arith.constant 0 : i32
    return %arg0, %c0_i32 : i32, i32
  }
  func.func @transform_1(%arg0: i32, %arg1: i32) -> (i32, i32) {
    %c0_i32 = arith.constant 0 : i32
    %c0_i32_0 = arith.constant 0 : i32
    return %c0_i32, %arg1 : i32, i32
  }
  func.func @transform_2(%arg0: i32, %arg1: i32) -> (i32, i32) {
    %c0_i32 = arith.constant 0 : i32
    %c0_i32_0 = arith.constant 0 : i32
    return %c0_i32, %arg1 : i32, i32
  }
  func.func @transform_3(%arg0: i32, %arg1: i32) -> (i32, i32) {
    %c0_i32 = arith.constant 0 : i32
    return %arg0, %arg1 : i32, i32
  }
}

</mosaic_0001>

<llo_original>
// kernel: tpu_custom_call.1
$region0: #{tpu_custom_call.1}
  #allocation0 [shape = 'u32[]', space=smem, size = 0x4, offset = 0x4, fixed_abs, tag = 'smem constant byte address 0x4 - core index']
  #allocation1 [shape = 'u32[72,128]{1,0:T(1,128)}', space=vmem, size = 0x9000, scoped, tag = 'internal scratch']
  %s0 = inlined_call_operand.hbm [shape: f32[32,128], index: 0, kind: input, shape index: {}]
  %s1 = inlined_call_operand.hbm [shape: f32[128,128], index: 1, kind: input, shape index: {}]
  %s2 = inlined_call_operand.vmem [shape: f32[1,128], index: 2, kind: input, shape index: {}]
  %s3 = inlined_call_operand.hbm [shape: f32[32,128], index: 3, kind: output, shape index: {}]
  %s4 = sld [smem:[#allocation0]]
  $region30: #{tpu_custom_call.1} parent=0
    _
  %s6 = ssub.s32 1, %s4
  %s7 = scalar_select 0, %s6, %s4
  $region1: #{tpu_custom_call.1} parent=0
    #allocation2 [shape = 'u8[16384]{0}', space=vmem, size = 0x4000, scoped, tag = 'input window, operand 0, single buffered']
    #allocation3 [shape = 's32[1]{0}', space=sflag, size = 0x4, scoped, tag = 'scoped memory for tpu_custom_call.1']
    #allocation4 [shape = 's32[1]{0}', space=sflag, size = 0x4, scoped, tag = 'scoped memory for tpu_custom_call.1']
    #allocation5 [shape = 'u8[65536]{0}', space=vmem, size = 0x10000, scoped, tag = 'input window, operand 1, single buffered']
    #allocation6 [shape = 's32[1]{0}', space=sflag, size = 0x4, scoped, tag = 'scoped memory for tpu_custom_call.1']
    #allocation7 [shape = 'u8[16384]{0}', space=vmem, size = 0x4000, scoped, tag = 'output window, operand 0, single buffered']
    %8 = vsyncpa [#allocation3], 0
    %9 = vsyncpa [#allocation6], 0
    %10 = vsyncpa [#allocation4], 0
    // Predicated region
    $region2: #{tpu_custom_call.1} parent=1 // pred_check
      _
    $region3: #{tpu_custom_call.1} parent=1 // pred_check_branch
      %12 = sbr.rel (0) target = $region5
    $region4: #{tpu_custom_call.1} parent=1 // pred_region
      %14 = vsyncadd [#allocation3], 0
      %s15 = sshll.u32 %s0, 4
      %s16 = int_to_ptr.hbm [resolvable:$true] %s15
      %s17 = sshll.u32 [#allocation2], 4
      %s18 = int_to_ptr.vmem [resolvable:$true] %s17
      %23 = dma.hbm_to_vmem [thread:$0]  %s16, 512, %s18, [#allocation3], 128, 128, 8
    $region5: #{tpu_custom_call.1} parent=1 // pred_fallthru
      _
    // Predicated region
    $region6: #{tpu_custom_call.1} parent=1 // pred_check
      _
    $region7: #{tpu_custom_call.1} parent=1 // pred_check_branch
      %25 = sbr.rel (0) target = $region9
    $region8: #{tpu_custom_call.1} parent=1 // pred_region
      %27 = vsyncadd [#allocation6], 0
      %s28 = sshll.u32 %s1, 4
      %s29 = int_to_ptr.hbm [resolvable:$true] %s28
      %s30 = sshll.u32 [#allocation5], 4
      %s31 = int_to_ptr.vmem [resolvable:$true] %s30
      %36 = dma.hbm_to_vmem [thread:$0]  %s29, 2048, %s31, [#allocation6], 128, 128, 8
    $region9: #{tpu_custom_call.1} parent=1 // pred_fallthru
      _
    // Predicated region
    $region10: #{tpu_custom_call.1} parent=1 // pred_check
      _
    $region11: #{tpu_custom_call.1} parent=1 // pred_check_branch
      %38 = sbr.rel (0) target = $region13
    $region12: #{tpu_custom_call.1} parent=1 // pred_region
      _
    $region13: #{tpu_custom_call.1} parent=1 // pred_fallthru
      _
    // Predicated region
    $region14: #{tpu_custom_call.1} parent=1 // pred_check
      _
    $region15: #{tpu_custom_call.1} parent=1 // pred_check_branch
      %40 = sbr.rel (0) target = $region17
    $region16: #{tpu_custom_call.1} parent=1 // pred_region
      %42 = dma.done [#allocation3], 512
    $region17: #{tpu_custom_call.1} parent=1 // pred_fallthru
      _
    // Predicated region
    $region18: #{tpu_custom_call.1} parent=1 // pred_check
      _
    $region19: #{tpu_custom_call.1} parent=1 // pred_check_branch
      %44 = sbr.rel (0) target = $region21
    $region20: #{tpu_custom_call.1} parent=1 // pred_region
      %46 = dma.done [#allocation6], 2048
    $region21: #{tpu_custom_call.1} parent=1 // pred_fallthru
      _
    %v47 = vld [vmem:[#allocation2] sm:$0xff]
    %v48 = vld [vmem:[#allocation2 + $0x8] sm:$0xff]
    %v49 = vld [vmem:[#allocation2 + $0x10] sm:$0xff]
    %v50 = vld [vmem:[#allocation2 + $0x18] sm:$0xff]
    %v51 = vld [vmem:[#allocation5] sm:$0xff]
    %v52 = vld [vmem:[#allocation5 + $0x8] sm:$0xff]
    %v53 = vld [vmem:[#allocation5 + $0x10] sm:$0xff]
    %v54 = vld [vmem:[#allocation5 + $0x18] sm:$0xff]
    %v55 = vld [vmem:[#allocation5 + $0x20] sm:$0xff]
    %v56 = vld [vmem:[#allocation5 + $0x28] sm:$0xff]
    %v57 = vld [vmem:[#allocation5 + $0x30] sm:$0xff]
    %v58 = vld [vmem:[#allocation5 + $0x38] sm:$0xff]
    %v59 = vld [vmem:[#allocation5 + $0x40] sm:$0xff]
    %v60 = vld [vmem:[#allocation5 + $0x48] sm:$0xff]
    %v61 = vld [vmem:[#allocation5 + $0x50] sm:$0xff]
    %v62 = vld [vmem:[#allocation5 + $0x58] sm:$0xff]
    %v63 = vld [vmem:[#allocation5 + $0x60] sm:$0xff]
    %v64 = vld [vmem:[#allocation5 + $0x68] sm:$0xff]
    %v65 = vld [vmem:[#allocation5 + $0x70] sm:$0xff]
    %v66 = vld [vmem:[#allocation5 + $0x78] sm:$0xff]
    %v67 = vld [vmem:[%s2] sm:$0x1]
    %v69 = vperm.slane %v67, 0
    %71 = vmatpush.msra.mxu0 %v66
    %72 = vmatpush.msra.mxu0 %v65
    %73 = vmatpush.msra.mxu0 %v64
    %74 = vmatpush.msra.mxu0 %v63
    %75 = vmatpush.msra.mxu0 %v62
    %76 = vmatpush.msra.mxu0 %v61
    %77 = vmatpush.msra.mxu0 %v60
    %78 = vmatpush.msra.mxu0 %v59
    %79 = vmatpush.msra.mxu0 %v58
    %80 = vmatpush.msra.mxu0 %v57
    %81 = vmatpush.msra.mxu0 %v56
    %82 = vmatpush.msra.mxu0 %v55
    %83 = vmatpush.msra.mxu0 %v54
    %84 = vmatpush.msra.mxu0 %v53
    %85 = vmatpush.msra.mxu0 %v52
    %86 = vmatpush.msra.mxu0 %v51
    %87 = vmatmul.f32.gmra.mxu0 %v47
    %v88 = vpop.f32.mrf.mxu0
    %v89 = vadd.f32 %v69, %v88
    %90 = vmatmul.f32.gmra.mxu0 %v48
    %v91 = vpop.f32.mrf.mxu0
    %v92 = vadd.f32 %v69, %v91
    %93 = vmatmul.f32.gmra.mxu0 %v49
    %v94 = vpop.f32.mrf.mxu0
    %v95 = vadd.f32 %v69, %v94
    %96 = vmatmul.f32.gmra.mxu0 %v50
    %v97 = vpop.f32.mrf.mxu0
    %v98 = vadd.f32 %v69, %v97
    %99 = vdwg.mxu0
    %100 = vst [vmem:[#allocation7] sm:$0xff] %v89
    %101 = vst [vmem:[#allocation7 + $0x8] sm:$0xff] %v92
    %102 = vst [vmem:[#allocation7 + $0x10] sm:$0xff] %v95
    %103 = vst [vmem:[#allocation7 + $0x18] sm:$0xff] %v98
    // Predicated region
    $region22: #{tpu_custom_call.1} parent=1 // pred_check
      _
    $region23: #{tpu_custom_call.1} parent=1 // pred_check_branch
      %105 = sbr.rel (0) target = $region25
    $region24: #{tpu_custom_call.1} parent=1 // pred_region
      %107 = vsyncadd [#allocation4], 0
      %s108 = sshll.u32 [#allocation7], 4
      %s109 = int_to_ptr.vmem [resolvable:$true] %s108
      %s110 = sshll.u32 %s3, 4
      %s111 = int_to_ptr.hbm [resolvable:$true] %s110
      %116 = dma.vmem_to_hbm [thread:$0]  %s109, 512, %s111, [#allocation4], 128, 128, 8
    $region25: #{tpu_custom_call.1} parent=1 // pred_fallthru
      _
    // Predicated region
    $region26: #{tpu_custom_call.1} parent=1 // pred_check
      _
    $region27: #{tpu_custom_call.1} parent=1 // pred_check_branch
      %118 = sbr.rel (0) target = $region29
    $region28: #{tpu_custom_call.1} parent=1 // pred_region
      %120 = dma.done [#allocation4], 512
    $region29: #{tpu_custom_call.1} parent=1 // pred_fallthru
      _
    %121 = vsyncpa [#allocation3], 1
    %122 = vsyncpa [#allocation6], 1
    %123 = vsyncpa [#allocation4], 1

</llo_original>
